<compile_context>
chip_gen: v7x
topology: tpu7x:2x2x1
jax: 0.10.0
libtpu: 0.0.40
codegen_flags: <defaults>
</compile_context>

<pallas_src>
import functools
import math

import jax
import jax.numpy as jnp
from jax.experimental import pallas as pl
from jax.experimental.pallas import tpu as pltpu


def _round_up(x, m):
    return ((x + m - 1) // m) * m


def _default_vmem_limit_bytes():
    """3/4 of physical VMEM, capped at 100 MiB (safe on v5e/v6e/v7x)."""
    cap = None
    try:
        cap = getattr(pltpu.get_tpu_info(), "vmem_capacity_bytes", None)
    except Exception:
        cap = None
    if not cap:
        cap = 128 * 1024 * 1024
    return min(int(cap) * 3 // 4, 100 * 1024 * 1024)


# ----------------------------------------------------------------------------
# Fused kernel: transform (computed at vocab tile 0, cached in VMEM) + decoder
# ----------------------------------------------------------------------------
def _mlm_head_kernel(x_ref, w1_ref, b1_ref, gamma_ref, beta_ref,
                     w2_ref, b2_ref, o_ref, h_ref, *, ln_eps):
    # Grid = (token tiles ["parallel"], vocab tiles ["arbitrary"]).
    # NOTE: the h_ref cache relies on the vocab axis being iterated
    # sequentially (j = 0 .. last) within each token tile.  That is guaranteed
    # because the vocab axis is marked "arbitrary" — never mark it "parallel".
    j = pl.program_id(1)  # vocab-tile index (inner, sequential)

    @pl.when(j == 0)
    def _():
        # dense(H->H): bf16 MXU matmul, f32 accumulation
        h = jnp.dot(x_ref[...], w1_ref[...],
                    preferred_element_type=jnp.float32)          # [TN, H] f32
        h = h + b1_ref[...].astype(jnp.float32)                  # [1, H] broadcast

        # exact (erf-based) GELU, matching torch.nn.functional.gelu default
        h = 0.5 * h * (1.0 + jax.lax.erf(h * (1.0 / math.sqrt(2.0))))

        # LayerNorm over hidden dim in f32
        mean = jnp.mean(h, axis=-1, keepdims=True)
        var = jnp.mean((h - mean) * (h - mean), axis=-1, keepdims=True)
        h = (h - mean) * jax.lax.rsqrt(var + ln_eps)
        h = (h * gamma_ref[...].astype(jnp.float32)
             + beta_ref[...].astype(jnp.float32))

        # cache as bf16 for the decoder matmuls of every vocab tile
        h_ref[...] = h.astype(h_ref.dtype)

    # decoder tile: bf16 MXU matmul, f32 accumulation, f32 bias
    out = jnp.dot(h_ref[...], w2_ref[...],
                  preferred_element_type=jnp.float32)             # [TN, TV]
    out = out + b2_ref[...].astype(jnp.float32)
    o_ref[...] = out.astype(o_ref.dtype)


# ----------------------------------------------------------------------------
# Wrapper
# ----------------------------------------------------------------------------
def bert_only_mlm_head(hidden_states, params, *, token_tile=512, vocab_tile=1024,
                       ln_eps=1e-12, out_dtype=jnp.bfloat16):
    """hidden_states: [B, S, H] -> logits [B, S, V] (default bf16 logits)."""
    B, S, H = hidden_states.shape
    V = params["decoder_b"].shape[0]
    N = B * S

    # bf16 inputs for the MXU (accumulation stays f32 inside the kernel)
    x2d = hidden_states.reshape(N, H).astype(jnp.bfloat16)
    w1 = params["dense_w"].astype(jnp.bfloat16)
    w2 = params["decoder_w"].astype(jnp.bfloat16)
    b1 = params["dense_b"].reshape(1, H).astype(jnp.float32)
    gamma = params["ln_gamma"].reshape(1, H).astype(jnp.float32)
    beta = params["ln_beta"].reshape(1, H).astype(jnp.float32)
    b2 = params["decoder_b"].reshape(1, V).astype(jnp.float32)

    # ---- token tiling (sublane axis): multiple of 16 (bf16 native (16,128));
    # cap so there are >= 2 token tiles when possible (v7x has 2 TensorCores
    # and the token axis is the only "parallel"/megacore dimension).
    tn = max(16, min(_round_up(token_tile, 16), _round_up(N, 16)))
    if N > 16:
        tn = min(tn, _round_up((N + 1) // 2, 16))
    Np = _round_up(N, tn)
    if Np != N:
        x2d = jnp.pad(x2d, ((0, Np - N), (0, 0)))

    # ---- vocab tiling (lane axis, multiple of 128); pad V if needed
    tv = min(_round_up(vocab_tile, 128), _round_up(V, 128))
    Vp = _round_up(V, tv)
    if Vp != V:
        w2 = jnp.pad(w2, ((0, 0), (0, Vp - V)))
        b2 = jnp.pad(b2, ((0, 0), (0, Vp - V)))

    grid = (Np // tn, Vp // tv)
    out_bytes = jnp.dtype(out_dtype).itemsize

    # Advisory cost hint: W2 is re-streamed from HBM once per token tile.
    cost = pl.CostEstimate(
        flops=2 * Np * H * H + 2 * Np * H * Vp,
        transcendentals=Np * H,
        bytes_accessed=(Np * H * 2 + H * H * 2 + H * 4 * 3 + Vp * 4
                        + (Np // tn) * H * Vp * 2 + Np * Vp * out_bytes),
    )

    logits2d = pl.pallas_call(
        functools.partial(_mlm_head_kernel, ln_eps=ln_eps),
        out_shape=jax.ShapeDtypeStruct((Np, Vp), out_dtype),
        grid_spec=pltpu.PrefetchScalarGridSpec(
            num_scalar_prefetch=0,
            grid=grid,
            in_specs=[
                pl.BlockSpec((tn, H), lambda i, j: (i, 0)),   # x: resident per token tile
                pl.BlockSpec((H, H), lambda i, j: (0, 0)),    # W1 (bf16), constant
                pl.BlockSpec((1, H), lambda i, j: (0, 0)),    # b1
                pl.BlockSpec((1, H), lambda i, j: (0, 0)),    # ln gamma
                pl.BlockSpec((1, H), lambda i, j: (0, 0)),    # ln beta
                pl.BlockSpec((H, tv), lambda i, j: (0, j)),   # W2 vocab tile (bf16)
                pl.BlockSpec((1, tv), lambda i, j: (0, j)),   # b2 vocab tile
            ],
            out_specs=pl.BlockSpec((tn, tv), lambda i, j: (i, j)),
            scratch_shapes=[pltpu.VMEM((tn, H), jnp.bfloat16)],  # cached transform h
        ),
        compiler_params=pltpu.CompilerParams(
            # vocab axis MUST stay "arbitrary" (sequential) for the h cache.
            dimension_semantics=("parallel", "arbitrary"),
            vmem_limit_bytes=_default_vmem_limit_bytes(),
        ),
        cost_estimate=cost,
    )(x2d, w1, b1, gamma, beta, w2, b2)

    return logits2d[:N, :V].reshape(B, S, V)


# ----------------------------------------------------------------------------
# Params + reference
# ----------------------------------------------------------------------------
def init_params(key, hidden_size, vocab_size):
    k1, k2, k3, k4, k5, k6 = jax.random.split(key, 6)
    scale = 1.0 / math.sqrt(hidden_size)
    return {
        # nn.Linear(H, H): weight stored already transposed to [in, out]
        "dense_w": jax.random.normal(k1, (hidden_size, hidden_size), jnp.float32) * scale,
        "dense_b": jax.random.normal(k3, (hidden_size,), jnp.float32) * 0.02,
        # nn.LayerNorm(H) (perturbed from ones/zeros to exercise the math)
        "ln_gamma": 1.0 + 0.02 * jax.random.normal(k4, (hidden_size,), jnp.float32),
        "ln_beta": 0.02 * jax.random.normal(k5, (hidden_size,), jnp.float32),
        # decoder nn.Linear(H, V) + shared bias parameter
        "decoder_w": jax.random.normal(k2, (hidden_size, vocab_size), jnp.float32) * scale,
        "decoder_b": 0.02 * jax.random.normal(k6, (vocab_size,), jnp.float32),
    }


def _reference(hidden_states, params):
    """Pure-JAX reference with the same bf16-matmul / f32-accumulate recipe."""
    B, S, H = hidden_states.shape
    x = hidden_states.reshape(-1, H).astype(jnp.bfloat16)
    h = jnp.dot(x, params["dense_w"].astype(jnp.bfloat16),
                preferred_element_type=jnp.float32) + params["dense_b"]
    h = 0.5 * h * (1.0 + jax.lax.erf(h * (1.0 / math.sqrt(2.0))))
    mean = jnp.mean(h, axis=-1, keepdims=True)
    var = jnp.mean((h - mean) ** 2, axis=-1, keepdims=True)
    h = (h - mean) * jax.lax.rsqrt(var + 1e-12)
    h = h * params["ln_gamma"] + params["ln_beta"]
    h = h.astype(jnp.bfloat16)
    logits = jnp.dot(h, params["decoder_w"].astype(jnp.bfloat16),
                     preferred_element_type=jnp.float32) + params["decoder_b"]
    return logits.reshape(B, S, -1)


if __name__ == "__main__":
    # Small BERT-ish shapes; V deliberately NOT a multiple of 128 to exercise
    # the vocab-padding path, and a small vocab_tile to exercise both grid axes.
    # The >=2-token-tile cap also makes the token ("parallel") axis multi-step.
    B, S, H, V = 2, 16, 128, 1000
    key = jax.random.PRNGKey(0)
    kx, kp = jax.random.split(key)

    params = init_params(kp, H, V)
    x = jax.random.normal(kx, (B, S, H), jnp.float32)
    ref = _reference(x, params)

    # 1) Default path: bf16 logits (halved HBM writeback).
    logits_bf16 = jax.block_until_ready(
        bert_only_mlm_head(x, params, vocab_tile=256))
    assert logits_bf16.shape == (B, S, V), logits_bf16.shape
    assert logits_bf16.dtype == jnp.bfloat16, logits_bf16.dtype
    err_bf16 = float(jnp.max(jnp.abs(logits_bf16.astype(jnp.float32) - ref)))
    assert err_bf16 < 5e-2, err_bf16   # bounded by bf16 rounding of O(1) logits

    # 2) Opt-in f32 logits: tight check against the reference.
    logits_f32 = jax.block_until_ready(
        bert_only_mlm_head(x, params, vocab_tile=256, out_dtype=jnp.float32))
    assert logits_f32.shape == (B, S, V), logits_f32.shape
    err_f32 = float(jnp.max(jnp.abs(logits_f32 - ref)))
    assert err_f32 < 2e-3, err_f32

    print("KERNEL_OK")
</pallas_src>

<mosaic_0001>
module attributes {stable_mosaic.version = 11 : i64} {
  func.func @_mlm_head_kernel(%arg0: i32, %arg1: i32, %arg2: memref<16x128xbf16, #tpu.memory_space<vmem>>, %arg3: memref<128x128xbf16, #tpu.memory_space<vmem>>, %arg4: memref<1x128xf32, #tpu.memory_space<vmem>>, %arg5: memref<1x128xf32, #tpu.memory_space<vmem>>, %arg6: memref<1x128xf32, #tpu.memory_space<vmem>>, %arg7: memref<128x256xbf16, #tpu.memory_space<vmem>>, %arg8: memref<1x256xf32, #tpu.memory_space<vmem>>, %arg9: memref<16x256xbf16, #tpu.memory_space<vmem>>, %arg10: memref<16x128xbf16, #tpu.memory_space<vmem>>) attributes {dimension_semantics = [#tpu.dimension_semantics<parallel>, #tpu.dimension_semantics<arbitrary>], iteration_bounds = array<i64: 2, 4>, scalar_prefetch = 0 : i64, scratch_operands = 1 : i64, tpu.core_type = #tpu.core_type<tc>, window_params = [{transform_indices = @transform_0, window_bounds = array<i64: 16, 128>}, {pipeline_mode = #tpu.pipeline_mode<synchronous>, transform_indices = @transform_1, window_bounds = array<i64: 128, 128>}, {pipeline_mode = #tpu.pipeline_mode<synchronous>, transform_indices = @transform_2, window_bounds = array<i64: 1, 128>}, {pipeline_mode = #tpu.pipeline_mode<synchronous>, transform_indices = @transform_3, window_bounds = array<i64: 1, 128>}, {pipeline_mode = #tpu.pipeline_mode<synchronous>, transform_indices = @transform_4, window_bounds = array<i64: 1, 128>}, {transform_indices = @transform_5, window_bounds = array<i64: 128, 256>}, {transform_indices = @transform_6, window_bounds = array<i64: 1, 256>}, {transform_indices = @transform_7, window_bounds = array<i64: 16, 256>}]} {
    %c0_i32 = arith.constant 0 : i32
    %0 = arith.cmpi eq, %arg1, %c0_i32 : i32
    %1 = arith.extui %0 : i1 to i32
    %c0_i32_0 = arith.constant 0 : i32
    %2 = arith.cmpi ne, %1, %c0_i32_0 : i32
    scf.if %2 {
      %c0_8 = arith.constant 0 : index
      %c0_9 = arith.constant 0 : index
      %11 = vector.load %arg2[%c0_8, %c0_9] : memref<16x128xbf16, #tpu.memory_space<vmem>>, vector<16x128xbf16>
      %c0_10 = arith.constant 0 : index
      %c0_11 = arith.constant 0 : index
      %12 = vector.load %arg3[%c0_10, %c0_11] : memref<128x128xbf16, #tpu.memory_space<vmem>>, vector<128x128xbf16>
      %cst_12 = arith.constant dense<0.000000e+00> : vector<16x128xf32>
      %13 = tpu.matmul %11, %12, %cst_12 {dimension_numbers = #tpu.dot_dimension_numbers<[1], [0], [0], [1], [0, 0, 1, 1], [], []>} : vector<16x128xbf16>, vector<128x128xbf16>, vector<16x128xf32> -> vector<16x128xf32>
      %c0_13 = arith.constant 0 : index
      %c0_14 = arith.constant 0 : index
      %14 = vector.load %arg4[%c0_13, %c0_14] : memref<1x128xf32, #tpu.memory_space<vmem>>, vector<1x128xf32>
      %15 = vector.broadcast %14 : vector<1x128xf32> to vector<16x128xf32>
      %16 = arith.addf %13, %15 : vector<16x128xf32>
      %cst_15 = arith.constant 5.000000e-01 : f32
      %17 = vector.broadcast %cst_15 : f32 to vector<16x128xf32>
      %18 = arith.mulf %17, %16 : vector<16x128xf32>
      %cst_16 = arith.constant 0.707106769 : f32
      %19 = vector.broadcast %cst_16 : f32 to vector<16x128xf32>
      %20 = arith.mulf %16, %19 : vector<16x128xf32>
      %21 = math.erf %20 : vector<16x128xf32>
      %cst_17 = arith.constant 1.000000e+00 : f32
      %22 = vector.broadcast %cst_17 : f32 to vector<16x128xf32>
      %23 = arith.addf %22, %21 : vector<16x128xf32>
      %24 = arith.mulf %18, %23 : vector<16x128xf32>
      %cst_18 = arith.constant dense<0.000000e+00> : vector<16xf32>
      %25 = vector.multi_reduction <add>, %24, %cst_18 [1] : vector<16x128xf32> to vector<16xf32>
      %26 = vector.shape_cast %25 : vector<16xf32> to vector<16x1xf32>
      %cst_19 = arith.constant 1.280000e+02 : f32
      %27 = vector.broadcast %cst_19 : f32 to vector<16x1xf32>
      %28 = arith.divf %26, %27 : vector<16x1xf32>
      %29 = vector.broadcast %28 : vector<16x1xf32> to vector<16x128xf32>
      %30 = arith.subf %24, %29 : vector<16x128xf32>
      %31 = vector.broadcast %28 : vector<16x1xf32> to vector<16x128xf32>
      %32 = arith.subf %24, %31 : vector<16x128xf32>
      %33 = arith.mulf %30, %32 : vector<16x128xf32>
      %cst_20 = arith.constant dense<0.000000e+00> : vector<16xf32>
      %34 = vector.multi_reduction <add>, %33, %cst_20 [1] : vector<16x128xf32> to vector<16xf32>
      %35 = vector.shape_cast %34 : vector<16xf32> to vector<16x1xf32>
      %cst_21 = arith.constant 1.280000e+02 : f32
      %36 = vector.broadcast %cst_21 : f32 to vector<16x1xf32>
      %37 = arith.divf %35, %36 : vector<16x1xf32>
      %38 = vector.broadcast %28 : vector<16x1xf32> to vector<16x128xf32>
      %39 = arith.subf %24, %38 : vector<16x128xf32>
      %cst_22 = arith.constant 9.99999996E-13 : f32
      %40 = vector.broadcast %cst_22 : f32 to vector<16x1xf32>
      %41 = arith.addf %37, %40 : vector<16x1xf32>
      %42 = math.rsqrt %41 : vector<16x1xf32>
      %43 = vector.broadcast %42 : vector<16x1xf32> to vector<16x128xf32>
      %44 = arith.mulf %39, %43 : vector<16x128xf32>
      %c0_23 = arith.constant 0 : index
      %c0_24 = arith.constant 0 : index
      %45 = vector.load %arg5[%c0_23, %c0_24] : memref<1x128xf32, #tpu.memory_space<vmem>>, vector<1x128xf32>
      %46 = vector.broadcast %45 : vector<1x128xf32> to vector<16x128xf32>
      %47 = arith.mulf %44, %46 : vector<16x128xf32>
      %c0_25 = arith.constant 0 : index
      %c0_26 = arith.constant 0 : index
      %48 = vector.load %arg6[%c0_25, %c0_26] : memref<1x128xf32, #tpu.memory_space<vmem>>, vector<1x128xf32>
      %49 = vector.broadcast %48 : vector<1x128xf32> to vector<16x128xf32>
      %50 = arith.addf %47, %49 : vector<16x128xf32>
      %51 = arith.truncf %50 : vector<16x128xf32> to vector<16x128xbf16>
      %c0_27 = arith.constant 0 : index
      %c0_28 = arith.constant 0 : index
      %52 = vector.load %arg10[%c0_27, %c0_28] : memref<16x128xbf16, #tpu.memory_space<vmem>>, vector<16x128xbf16>
      tpu.vector_store %arg10[%c0_27, %c0_28], %51 {strides = array<i32>} : memref<16x128xbf16, #tpu.memory_space<vmem>>, vector<16x128xbf16>,
    } else {
    }
    %c0 = arith.constant 0 : index
    %c0_1 = arith.constant 0 : index
    %3 = vector.load %arg10[%c0, %c0_1] : memref<16x128xbf16, #tpu.memory_space<vmem>>, vector<16x128xbf16>
    %c0_2 = arith.constant 0 : index
    %c0_3 = arith.constant 0 : index
    %4 = vector.load %arg7[%c0_2, %c0_3] : memref<128x256xbf16, #tpu.memory_space<vmem>>, vector<128x256xbf16>
    %cst = arith.constant dense<0.000000e+00> : vector<16x256xf32>
    %5 = tpu.matmul %3, %4, %cst {dimension_numbers = #tpu.dot_dimension_numbers<[1], [0], [0], [1], [0, 0, 1, 1], [], []>} : vector<16x128xbf16>, vector<128x256xbf16>, vector<16x256xf32> -> vector<16x256xf32>
    %c0_4 = arith.constant 0 : index
    %c0_5 = arith.constant 0 : index
    %6 = vector.load %arg8[%c0_4, %c0_5] : memref<1x256xf32, #tpu.memory_space<vmem>>, vector<1x256xf32>
    %7 = vector.broadcast %6 : vector<1x256xf32> to vector<16x256xf32>
    %8 = arith.addf %5, %7 : vector<16x256xf32>
    %9 = arith.truncf %8 : vector<16x256xf32> to vector<16x256xbf16>
    %c0_6 = arith.constant 0 : index
    %c0_7 = arith.constant 0 : index
    %10 = vector.load %arg9[%c0_6, %c0_7] : memref<16x256xbf16, #tpu.memory_space<vmem>>, vector<16x256xbf16>
    tpu.vector_store %arg9[%c0_6, %c0_7], %9 {strides = array<i32>} : memref<16x256xbf16, #tpu.memory_space<vmem>>, vector<16x256xbf16>,
    return
  }
  func.func @transform_0(%arg0: i32, %arg1: i32) -> (i32, i32) {
    %c0_i32 = arith.constant 0 : i32
    %c0_i32_0 = arith.constant 0 : i32
    return %arg0, %c0_i32 : i32, i32
  }
  func.func @transform_1(%arg0: i32, %arg1: i32) -> (i32, i32) {
    %c0_i32 = arith.constant 0 : i32
    %c0_i32_0 = arith.constant 0 : i32
    %c0_i32_1 = arith.constant 0 : i32
    return %c0_i32, %c0_i32_0 : i32, i32
  }
  func.func @transform_2(%arg0: i32, %arg1: i32) -> (i32, i32) {
    %c0_i32 = arith.constant 0 : i32
    %c0_i32_0 = arith.constant 0 : i32
    %c0_i32_1 = arith.constant 0 : i32
    return %c0_i32, %c0_i32_0 : i32, i32
  }
  func.func @transform_3(%arg0: i32, %arg1: i32) -> (i32, i32) {
    %c0_i32 = arith.constant 0 : i32
    %c0_i32_0 = arith.constant 0 : i32
    %c0_i32_1 = arith.constant 0 : i32
    return %c0_i32, %c0_i32_0 : i32, i32
  }
  func.func @transform_4(%arg0: i32, %arg1: i32) -> (i32, i32) {
    %c0_i32 = arith.constant 0 : i32
    %c0_i32_0 = arith.constant 0 : i32
    %c0_i32_1 = arith.constant 0 : i32
    return %c0_i32, %c0_i32_0 : i32, i32
  }
  func.func @transform_5(%arg0: i32, %arg1: i32) -> (i32, i32) {
    %c0_i32 = arith.constant 0 : i32
    %c0_i32_0 = arith.constant 0 : i32
    return %c0_i32, %arg1 : i32, i32
  }
  func.func @transform_6(%arg0: i32, %arg1: i32) -> (i32, i32) {
    %c0_i32 = arith.constant 0 : i32
    %c0_i32_0 = arith.constant 0 : i32
    return %c0_i32, %arg1 : i32, i32
  }
  func.func @transform_7(%arg0: i32, %arg1: i32) -> (i32, i32) {
    %c0_i32 = arith.constant 0 : i32
    return %arg0, %arg1 : i32, i32
  }
}

</mosaic_0001>

<llo_original>
// kernel: tpu_custom_call.1
$region0: #{tpu_custom_call.1}
  #allocation0 [shape = 'u32[]', space=smem, size = 0x4, offset = 0x4, fixed_abs, tag = 'smem constant byte address 0x4 - core index']
  #allocation1 [shape = 'u32[144,128]{1,0:T(1,128)}', space=vmem, size = 0x12000, scoped, tag = 'internal scratch']
  #allocation2 [shape = 'bf16[16,128]{1,0:T(16,128)(2,1)}', space=vmem, size = 0x1000, scoped, tag = 'scratch operand']
  %s0 = inlined_call_operand.hbm [shape: bf16[32,128], index: 0, kind: input, shape index: {}]
  %s1 = inlined_call_operand.hbm [shape: bf16[128,128], index: 1, kind: input, shape index: {}]
  %s2 = inlined_call_operand.hbm [shape: f32[1,128], index: 2, kind: input, shape index: {}]
  %s3 = inlined_call_operand.hbm [shape: f32[1,128], index: 3, kind: input, shape index: {}]
  %s4 = inlined_call_operand.hbm [shape: f32[1,128], index: 4, kind: input, shape index: {}]
  %s5 = inlined_call_operand.hbm [shape: bf16[128,1024], index: 5, kind: input, shape index: {}]
  %s6 = inlined_call_operand.hbm [shape: f32[1,1024], index: 6, kind: input, shape index: {}]
  %s7 = inlined_call_operand.hbm [shape: bf16[32,1024], index: 7, kind: output, shape index: {}]
  %s8 = sld [smem:[#allocation0]]
  $region93: #{tpu_custom_call.1} parent=0
    _
  %s10 = ssub.s32 1, %s8
  %s11 = scalar_select 0, %s10, %s8
  $region1: #{tpu_custom_call.1} parent=0
    #allocation3 [shape = 'u8[8192]{0}', space=vmem, size = 0x2000, scoped, tag = 'input window, operand 0']
    #allocation4 [shape = 's32[2]{0}', space=sflag, size = 0x8, scoped, tag = 'scoped memory for tpu_custom_call.1']
    #allocation5 [shape = 's32[2]{0}', space=sflag, size = 0x8, scoped, tag = 'scoped memory for tpu_custom_call.1']
    #allocation6 [shape = 'u8[32768]{0}', space=vmem, size = 0x8000, scoped, tag = 'input window, operand 1, single buffered']
    #allocation7 [shape = 's32[1]{0}', space=sflag, size = 0x4, scoped, tag = 'scoped memory for tpu_custom_call.1']
    #allocation8 [shape = 'u8[512]{0}', space=vmem, size = 0x400, scoped, tag = 'input window, operand 2, single buffered']
    #allocation9 [shape = 'u8[512]{0}', space=vmem, size = 0x400, scoped, tag = 'input window, operand 3, single buffered']
    #allocation10 [shape = 's32[1]{0}', space=sflag, size = 0x4, scoped, tag = 'scoped memory for tpu_custom_call.1']
    #allocation11 [shape = 'u8[512]{0}', space=vmem, size = 0x400, scoped, tag = 'input window, operand 4, single buffered']
    #allocation12 [shape = 'u8[131072]{0}', space=vmem, size = 0x20000, scoped, tag = 'input window, operand 5']
    #allocation13 [shape = 's32[2]{0}', space=sflag, size = 0x8, scoped, tag = 'scoped memory for tpu_custom_call.1']
    #allocation14 [shape = 'u8[2048]{0}', space=vmem, size = 0x800, scoped, tag = 'input window, operand 6']
    #allocation15 [shape = 'u8[16384]{0}', space=vmem, size = 0x4000, scoped, tag = 'output window, operand 0']
    %12 = vsyncpa [#allocation4], 0
    %s13 = scalar_lea.sflag [#allocation4], 1
    %14 = vsyncpa %s13, 0
    %15 = vsyncpa [#allocation7], 0
    %16 = vsyncpa [#allocation10], 0
    %17 = vsyncpa [#allocation13], 0
    %s18 = scalar_lea.sflag [#allocation13], 1
    %19 = vsyncpa %s18, 0
    %20 = vsyncpa [#allocation5], 0
    %s21 = scalar_lea.sflag [#allocation5], 1
    %22 = vsyncpa %s21, 0
    loop: start=0, step=1, limit=10
    $region2: #{tpu_custom_call.1} parent=1 // loop_pre_header
      _
    $region3: #{tpu_custom_call.1} parent=1 // loop_header
      %s24 = sphi 0, %s28
      %p25 = scmp.ge.s32.totalorder %s24, 10
      %s31 = sphi 0, %s43
      %s32 = sphi 0, %s39
      %s33 = sphi 0, %s31
      %s34 = sphi 0, %s32
      %s35 = sphi 0, %s33
      %s36 = sphi 0, %s34
      %s46 = sphi 0, %s48
      %s49 = sphi 0, %s46
      %s50 = sphi 0, %s49
      %s66 = sphi 0, %s50
      %s70 = sphi 0, %s70
      %s72 = sphi 0, %s70
      %s73 = sphi 0, %s72
      %s87 = sphi 0, %s73
      %s91 = sphi 0, %s91
      %s93 = sphi 0, %s91
      %s94 = sphi 0, %s93
      %s108 = sphi 0, %s94
      %s112 = sphi 0, %s112
      %s114 = sphi 0, %s112
      %s115 = sphi 0, %s114
      %s129 = sphi 0, %s115
      %s133 = sphi 0, %s133
      %s135 = sphi 0, %s133
      %s136 = sphi 0, %s135
      %s150 = sphi 0, %s136
      %s156 = sphi 0, %s158
      %s159 = sphi 0, %s156
      %s160 = sphi 0, %s159
      %s176 = sphi 0, %s160
      %s182 = sphi 0, %s184
      %s185 = sphi 0, %s182
      %s186 = sphi 0, %s185
      %s202 = sphi 0, %s186
      %s210 = sphi 0, %s212
      %s213 = sphi 0, %s210
      %s214 = sphi 0, %s213
      %s230 = sphi 0, %s214
    $region4: #{tpu_custom_call.1} parent=1 // loop_header_branch
      %27 = sbr.rel (%p25) target = $region8
    $region5: #{tpu_custom_call.1} parent=1 // loop_body
      %s29 = ssub.s32 %s24, 1
      %s30 = ssub.s32 %s24, 2
      %s37 = sadd.s32 1, %s32
      %p38 = scmp.ge.s32.totalorder %s37, 4
      %s39 = scalar_select %p38, 0, %s37
      %s40 = sadd.s32 1, %s31
      %s41 = scalar_select %p38, %s40, %s31
      %p42 = scmp.ge.s32.totalorder %s41, 2
      %s43 = scalar_select %p42, 0, %s41
      %s44 = ssub.s32 %s31, %s43
      %p45 = scmp.eq.s32.totalorder %s44, 0
      %s47 = sadd.s32 %s46, 1
      %s48 = scalar_select %p45, %s46, %s47
      %p51 = pneg %p45
      %p52 = scmp.eq.s32.totalorder %s24, 7
      %p53 = por %p51, %p52
      %p54 = scmp.ne.s32.totalorder %s46, %s49
      %p55 = scmp.eq.s32.totalorder %s24, 0
      %p56 = por %p54, %p55
      %p57 = scmp.ne.s32.totalorder %s46, %s49
      %p58 = scmp.eq.s32.totalorder %s29, 7
      %p59 = por %p57, %p58
      %p60 = scmp.ne.s32.totalorder %s49, %s50
      %p61 = scmp.eq.s32.totalorder %s29, 0
      %p62 = por %p60, %p61
      %p63 = scmp.ne.s32.totalorder %s49, %s50
      %p64 = scmp.eq.s32.totalorder %s30, 7
      %p65 = por %p63, %p64
      %p67 = scmp.ne.s32.totalorder %s50, %s66
      %p68 = scmp.eq.s32.totalorder %s30, 0
      %p69 = por %p67, %p68
      %s71 = sadd.s32 %s70, 1
      %p74 = scmp.eq.s32.totalorder %s24, 7
      %p75 = scmp.ne.s32.totalorder %s70, %s72
      %p76 = scmp.eq.s32.totalorder %s24, 0
      %p77 = por %p75, %p76
      %p78 = scmp.ne.s32.totalorder %s70, %s72
      %p79 = scmp.eq.s32.totalorder %s29, 7
      %p80 = por %p78, %p79
      %p81 = scmp.ne.s32.totalorder %s72, %s73
      %p82 = scmp.eq.s32.totalorder %s29, 0
      %p83 = por %p81, %p82
      %p84 = scmp.ne.s32.totalorder %s72, %s73
      %p85 = scmp.eq.s32.totalorder %s30, 7
      %p86 = por %p84, %p85
      %p88 = scmp.ne.s32.totalorder %s73, %s87
      %p89 = scmp.eq.s32.totalorder %s30, 0
      %p90 = por %p88, %p89
      %s92 = sadd.s32 %s91, 1
      %p95 = scmp.eq.s32.totalorder %s24, 7
      %p96 = scmp.ne.s32.totalorder %s91, %s93
      %p97 = scmp.eq.s32.totalorder %s24, 0
      %p98 = por %p96, %p97
      %p99 = scmp.ne.s32.totalorder %s91, %s93
      %p100 = scmp.eq.s32.totalorder %s29, 7
      %p101 = por %p99, %p100
      %p102 = scmp.ne.s32.totalorder %s93, %s94
      %p103 = scmp.eq.s32.totalorder %s29, 0
      %p104 = por %p102, %p103
      %p105 = scmp.ne.s32.totalorder %s93, %s94
      %p106 = scmp.eq.s32.totalorder %s30, 7
      %p107 = por %p105, %p106
      %p109 = scmp.ne.s32.totalorder %s94, %s108
      %p110 = scmp.eq.s32.totalorder %s30, 0
      %p111 = por %p109, %p110
      %s113 = sadd.s32 %s112, 1
      %p116 = scmp.eq.s32.totalorder %s24, 7
      %p117 = scmp.ne.s32.totalorder %s112, %s114
      %p118 = scmp.eq.s32.totalorder %s24, 0
      %p119 = por %p117, %p118
      %p120 = scmp.ne.s32.totalorder %s112, %s114
      %p121 = scmp.eq.s32.totalorder %s29, 7
      %p122 = por %p120, %p121
      %p123 = scmp.ne.s32.totalorder %s114, %s115
      %p124 = scmp.eq.s32.totalorder %s29, 0
      %p125 = por %p123, %p124
      %p126 = scmp.ne.s32.totalorder %s114, %s115
      %p127 = scmp.eq.s32.totalorder %s30, 7
      %p128 = por %p126, %p127
      %p130 = scmp.ne.s32.totalorder %s115, %s129
      %p131 = scmp.eq.s32.totalorder %s30, 0
      %p132 = por %p130, %p131
      %s134 = sadd.s32 %s133, 1
      %p137 = scmp.eq.s32.totalorder %s24, 7
      %p138 = scmp.ne.s32.totalorder %s133, %s135
      %p139 = scmp.eq.s32.totalorder %s24, 0
      %p140 = por %p138, %p139
      %p141 = scmp.ne.s32.totalorder %s133, %s135
      %p142 = scmp.eq.s32.totalorder %s29, 7
      %p143 = por %p141, %p142
      %p144 = scmp.ne.s32.totalorder %s135, %s136
      %p145 = scmp.eq.s32.totalorder %s29, 0
      %p146 = por %p144, %p145
      %p147 = scmp.ne.s32.totalorder %s135, %s136
      %p148 = scmp.eq.s32.totalorder %s30, 7
      %p149 = por %p147, %p148
      %p151 = scmp.ne.s32.totalorder %s136, %s150
      %p152 = scmp.eq.s32.totalorder %s30, 0
      %p153 = por %p151, %p152
      %s154 = ssub.s32 %s32, %s39
      %p155 = scmp.eq.s32.totalorder %s154, 0
      %s157 = sadd.s32 %s156, 1
      %s158 = scalar_select %p155, %s156, %s157
      %p161 = pneg %p155
      %p162 = scmp.eq.s32.totalorder %s24, 7
      %p163 = por %p161, %p162
      %p164 = scmp.ne.s32.totalorder %s156, %s159
      %p165 = scmp.eq.s32.totalorder %s24, 0
      %p166 = por %p164, %p165
      %p167 = scmp.ne.s32.totalorder %s156, %s159
      %p168 = scmp.eq.s32.totalorder %s29, 7
      %p169 = por %p167, %p168
      %p170 = scmp.ne.s32.totalorder %s159, %s160
      %p171 = scmp.eq.s32.totalorder %s29, 0
      %p172 = por %p170, %p171
      %p173 = scmp.ne.s32.totalorder %s159, %s160
      %p174 = scmp.eq.s32.totalorder %s30, 7
      %p175 = por %p173, %p174
      %p177 = scmp.ne.s32.totalorder %s160, %s176
      %p178 = scmp.eq.s32.totalorder %s30, 0
      %p179 = por %p177, %p178
      %s180 = ssub.s32 %s32, %s39
      %p181 = scmp.eq.s32.totalorder %s180, 0
      %s183 = sadd.s32 %s182, 1
      %s184 = scalar_select %p181, %s182, %s183
      %p187 = pneg %p181
      %p188 = scmp.eq.s32.totalorder %s24, 7
      %p189 = por %p187, %p188
      %p190 = scmp.ne.s32.totalorder %s182, %s185
      %p191 = scmp.eq.s32.totalorder %s24, 0
      %p192 = por %p190, %p191
      %p193 = scmp.ne.s32.totalorder %s182, %s185
      %p194 = scmp.eq.s32.totalorder %s29, 7
      %p195 = por %p193, %p194
      %p196 = scmp.ne.s32.totalorder %s185, %s186
      %p197 = scmp.eq.s32.totalorder %s29, 0
      %p198 = por %p196, %p197
      %p199 = scmp.ne.s32.totalorder %s185, %s186
      %p200 = scmp.eq.s32.totalorder %s30, 7
      %p201 = por %p199, %p200
      %p203 = scmp.ne.s32.totalorder %s186, %s202
      %p204 = scmp.eq.s32.totalorder %s30, 0
      %p205 = por %p203, %p204
      %s206 = ssub.s32 %s31, %s43
      %s207 = ssub.s32 %s32, %s39
      %s208 = sor.u32 %s206, %s207
      %p209 = scmp.eq.s32.totalorder %s208, 0
      %s211 = sadd.s32 %s210, 1
      %s212 = scalar_select %p209, %s210, %s211
      %p215 = pneg %p209
      %p216 = scmp.eq.s32.totalorder %s24, 7
      %p217 = por %p215, %p216
      %p218 = scmp.ne.s32.totalorder %s210, %s213
      %p219 = scmp.eq.s32.totalorder %s24, 0
      %p220 = por %p218, %p219
      %p221 = scmp.ne.s32.totalorder %s210, %s213
      %p222 = scmp.eq.s32.totalorder %s29, 7
      %p223 = por %p221, %p222
      %p224 = scmp.ne.s32.totalorder %s213, %s214
      %p225 = scmp.eq.s32.totalorder %s29, 0
      %p226 = por %p224, %p225
      %p227 = scmp.ne.s32.totalorder %s213, %s214
      %p228 = scmp.eq.s32.totalorder %s30, 7
      %p229 = por %p227, %p228
      %p231 = scmp.ne.s32.totalorder %s214, %s230
      %p232 = scmp.eq.s32.totalorder %s30, 0
      %p233 = por %p231, %p232
      %p234 = scmp.le.s32.totalorder 1, %s24
      %p235 = scmp.lt.s32.totalorder %s24, 9
      %p236 = pnand %p234, %p235
      %p237 = pneg %p236
      // Predicated region
      $region9: #{tpu_custom_call.1} parent=5 // pred_check
        _
      $region10: #{tpu_custom_call.1} parent=5 // pred_check_branch
        %239 = sbr.rel (%p236) target = $region12
      $region11: #{tpu_custom_call.1} parent=5 // pred_region
        %s240 = ssub.s32 %s24, 1
        // Predicated region
        $region13: #{tpu_custom_call.1} parent=11 // pred_check
          %p241 = pneg %p83
        $region14: #{tpu_custom_call.1} parent=11 // pred_check_branch
          %243 = sbr.rel (%p241) target = $region16
        $region15: #{tpu_custom_call.1} parent=11 // pred_region
          %s245 = ssub.s32 1024, 1024
          %246 = vsyncadd [#allocation7], %s245
          %s247 = sshll.u32 [#allocation6], 4
          %s248 = int_to_ptr.vmem [resolvable:$true] %s247
          %253 = dma.hbm_to_vmem [thread:$0]  %s1, 1024, %s248, [#allocation7], 64, 64, 4
        $region16: #{tpu_custom_call.1} parent=11 // pred_fallthru
          _
        // Predicated region
        $region17: #{tpu_custom_call.1} parent=11 // pred_check
          %p254 = pneg %p104
        $region18: #{tpu_custom_call.1} parent=11 // pred_check_branch
          %256 = sbr.rel (%p254) target = $region20
        $region19: #{tpu_custom_call.1} parent=11 // pred_region
          %s258 = ssub.s32 16, 16
          %259 = vsyncadd [#allocation7], %s258
          %s261 = sshll.u32 [#allocation8], 4
          %s262 = int_to_ptr.vmem [resolvable:$true] %s261
          %264 = dma.hbm_to_vmem [thread:$0]  %s2, 16, %s262, [#allocation7]
        $region20: #{tpu_custom_call.1} parent=11 // pred_fallthru
          _
        // Predicated region
        $region21: #{tpu_custom_call.1} parent=11 // pred_check
          %p265 = pneg %p125
        $region22: #{tpu_custom_call.1} parent=11 // pred_check_branch
          %267 = sbr.rel (%p265) target = $region24
        $region23: #{tpu_custom_call.1} parent=11 // pred_region
          %s269 = ssub.s32 16, 16
          %270 = vsyncadd [#allocation10], %s269
          %s272 = sshll.u32 [#allocation9], 4
          %s273 = int_to_ptr.vmem [resolvable:$true] %s272
          %275 = dma.hbm_to_vmem [thread:$0]  %s3, 16, %s273, [#allocation10]
        $region24: #{tpu_custom_call.1} parent=11 // pred_fallthru
          _
        // Predicated region
        $region25: #{tpu_custom_call.1} parent=11 // pred_check
          %p276 = pneg %p146
        $region26: #{tpu_custom_call.1} parent=11 // pred_check_branch
          %278 = sbr.rel (%p276) target = $region28
        $region27: #{tpu_custom_call.1} parent=11 // pred_region
          %s280 = ssub.s32 16, 16
          %281 = vsyncadd [#allocation10], %s280
          %s283 = sshll.u32 [#allocation11], 4
          %s284 = int_to_ptr.vmem [resolvable:$true] %s283
          %286 = dma.hbm_to_vmem [thread:$0]  %s4, 16, %s284, [#allocation10]
        $region28: #{tpu_custom_call.1} parent=11 // pred_fallthru
          _
      $region12: #{tpu_custom_call.1} parent=5 // pred_fallthru
        _
      %p287 = scmp.lt.s32.totalorder %s24, 8
      // Predicated region
      $region29: #{tpu_custom_call.1} parent=5 // pred_check
        %p288 = pneg %p287
      $region30: #{tpu_custom_call.1} parent=5 // pred_check_branch
        %290 = sbr.rel (%p288) target = $region32
      $region31: #{tpu_custom_call.1} parent=5 // pred_region
        // Predicated region
        $region33: #{tpu_custom_call.1} parent=31 // pred_check
          %p291 = pneg %p56
        $region34: #{tpu_custom_call.1} parent=31 // pred_check_branch
          %293 = sbr.rel (%p291) target = $region36
        $region35: #{tpu_custom_call.1} parent=31 // pred_region
          %s294 = sand.u32 %s46, 1
          %s295 = scalar_lea.sflag [#allocation4], %s294
          %s296 = sand.u32 %s46, 1
          %s297 = smul.addr %s296, 8
          %s298 = scalar_lea.vmem [#allocation3], %s297
          %s299 = smul.u32 2, %s31
          %s301 = ssub.s32 128, 128
          %302 = vsyncadd %s295, %s301
          %s303 = smul.addr %s299, 64
          %s304 = scalar_lea.hbm %s0, %s303
          %s305 = sshll.u32 %s298, 4
          %s306 = int_to_ptr.vmem [resolvable:$true] %s305
          %311 = dma.hbm_to_vmem [thread:$0]  %s304, 128, %s306, %s295, 64, 64, 4
        $region36: #{tpu_custom_call.1} parent=31 // pred_fallthru
          _
        // Predicated region
        $region37: #{tpu_custom_call.1} parent=31 // pred_check
          %p312 = pneg %p166
        $region38: #{tpu_custom_call.1} parent=31 // pred_check_branch
          %314 = sbr.rel (%p312) target = $region40
        $region39: #{tpu_custom_call.1} parent=31 // pred_region
          %s315 = sand.u32 %s24, 1
          %s316 = scalar_lea.sflag [#allocation13], %s315
          %s317 = sand.u32 %s156, 1
          %s318 = smul.addr %s317, 128
          %s319 = scalar_lea.vmem [#allocation12], %s318
          %s320 = smul.u32 2, %s32
          %s322 = ssub.s32 2048, 2048
          %323 = vsyncadd %s316, %s322
          %s324 = smul.addr %s320, 64
          %s325 = scalar_lea.hbm %s5, %s324
          %s326 = sshll.u32 %s319, 4
          %s327 = int_to_ptr.vmem [resolvable:$true] %s326
          %332 = dma.hbm_to_vmem [thread:$0]  %s325, 2048, %s327, %s316, 512, 128, 8
        $region40: #{tpu_custom_call.1} parent=31 // pred_fallthru
          _
        // Predicated region
        $region41: #{tpu_custom_call.1} parent=31 // pred_check
          %p333 = pneg %p192
        $region42: #{tpu_custom_call.1} parent=31 // pred_check_branch
          %335 = sbr.rel (%p333) target = $region44
        $region43: #{tpu_custom_call.1} parent=31 // pred_region
          %s336 = sand.u32 %s24, 1
          %s337 = scalar_lea.sflag [#allocation13], %s336
          %s338 = sand.u32 %s182, 1
          %s339 = smul.addr %s338, 2
          %s340 = scalar_lea.vmem [#allocation14], %s339
          %s341 = smul.u32 2, %s32
          %s343 = ssub.s32 32, 32
          %344 = vsyncadd %s337, %s343
          %s345 = smul.addr %s341, 16
          %s346 = scalar_lea.hbm %s6, %s345
          %s348 = sshll.u32 %s340, 4
          %s349 = int_to_ptr.vmem [resolvable:$true] %s348
          %351 = dma.hbm_to_vmem [thread:$0]  %s346, 32, %s349, %s337
        $region44: #{tpu_custom_call.1} parent=31 // pred_fallthru
          _
      $region32: #{tpu_custom_call.1} parent=5 // pred_fallthru
        _
      %p352 = scmp.le.s32.totalorder 1, %s24
      %p353 = scmp.lt.s32.totalorder %s24, 9
      %p354 = pnand %p352, %p353
      %p355 = pneg %p354
      // Predicated region
      $region45: #{tpu_custom_call.1} parent=5 // pred_check
        _
      $region46: #{tpu_custom_call.1} parent=5 // pred_check_branch
        %357 = sbr.rel (%p354) target = $region48
      $region47: #{tpu_custom_call.1} parent=5 // pred_region
        %s358 = ssub.s32 %s24, 1
        %s359 = sand.u32 %s49, 1
        %s360 = scalar_lea.sflag [#allocation4], %s359
        %s361 = sand.u32 %s49, 1
        %s362 = smul.addr %s361, 8
        %s363 = scalar_lea.vmem [#allocation3], %s362
        // Predicated region
        $region49: #{tpu_custom_call.1} parent=47 // pred_check
          %p364 = pneg %p62
        $region50: #{tpu_custom_call.1} parent=47 // pred_check_branch
          %366 = sbr.rel (%p364) target = $region52
        $region51: #{tpu_custom_call.1} parent=47 // pred_region
          %367 = dma.done %s360, 128
        $region52: #{tpu_custom_call.1} parent=47 // pred_fallthru
          _
        // Predicated region
        $region53: #{tpu_custom_call.1} parent=47 // pred_check
          %p368 = pneg %p83
        $region54: #{tpu_custom_call.1} parent=47 // pred_check_branch
          %370 = sbr.rel (%p368) target = $region56
        $region55: #{tpu_custom_call.1} parent=47 // pred_region
          %371 = dma.done [#allocation7], 1024
        $region56: #{tpu_custom_call.1} parent=47 // pred_fallthru
          _
        // Predicated region
        $region57: #{tpu_custom_call.1} parent=47 // pred_check
          %p372 = pneg %p104
        $region58: #{tpu_custom_call.1} parent=47 // pred_check_branch
          %374 = sbr.rel (%p372) target = $region60
        $region59: #{tpu_custom_call.1} parent=47 // pred_region
          %375 = dma.done [#allocation7], 16
        $region60: #{tpu_custom_call.1} parent=47 // pred_fallthru
          _
        // Predicated region
        $region61: #{tpu_custom_call.1} parent=47 // pred_check
          %p376 = pneg %p125
        $region62: #{tpu_custom_call.1} parent=47 // pred_check_branch
          %378 = sbr.rel (%p376) target = $region64
        $region63: #{tpu_custom_call.1} parent=47 // pred_region
          %379 = dma.done [#allocation10], 16
        $region64: #{tpu_custom_call.1} parent=47 // pred_fallthru
          _
        // Predicated region
        $region65: #{tpu_custom_call.1} parent=47 // pred_check
          %p380 = pneg %p146
        $region66: #{tpu_custom_call.1} parent=47 // pred_check_branch
          %382 = sbr.rel (%p380) target = $region68
        $region67: #{tpu_custom_call.1} parent=47 // pred_region
          %383 = dma.done [#allocation10], 16
        $region68: #{tpu_custom_call.1} parent=47 // pred_fallthru
          _
        %s384 = sand.u32 %s29, 1
        %s385 = scalar_lea.sflag [#allocation13], %s384
        %s386 = sand.u32 %s159, 1
        %s387 = smul.addr %s386, 128
        %s388 = scalar_lea.vmem [#allocation12], %s387
        // Predicated region
        $region69: #{tpu_custom_call.1} parent=47 // pred_check
          %p389 = pneg %p172
        $region70: #{tpu_custom_call.1} parent=47 // pred_check_branch
          %391 = sbr.rel (%p389) target = $region72
        $region71: #{tpu_custom_call.1} parent=47 // pred_region
          %392 = dma.done %s385, 2048
        $region72: #{tpu_custom_call.1} parent=47 // pred_fallthru
          _
        %s393 = sand.u32 %s29, 1
        %s394 = scalar_lea.sflag [#allocation13], %s393
        %s395 = sand.u32 %s185, 1
        %s396 = smul.addr %s395, 2
        %s397 = scalar_lea.vmem [#allocation14], %s396
        // Predicated region
        $region73: #{tpu_custom_call.1} parent=47 // pred_check
          %p398 = pneg %p198
        $region74: #{tpu_custom_call.1} parent=47 // pred_check_branch
          %400 = sbr.rel (%p398) target = $region76
        $region75: #{tpu_custom_call.1} parent=47 // pred_region
          %401 = dma.done %s394, 32
        $region76: #{tpu_custom_call.1} parent=47 // pred_fallthru
          _
        %s402 = sand.u32 %s49, 1
        %s403 = scalar_lea.sflag [#allocation4], %s402
        %s404 = sand.u32 %s49, 1
        %s405 = smul.addr %s404, 8
        %s406 = scalar_lea.vmem [#allocation3], %s405
        %p407 = pneg %p62
        %p408 = pneg %p59
        %p409 = pneg %p83
        %p410 = pneg %p80
        %p411 = pneg %p104
        %p412 = pneg %p101
        %p413 = pneg %p125
        %p414 = pneg %p122
        %p415 = pneg %p146
        %p416 = pneg %p143
        %s417 = sand.u32 %s29, 1
        %s418 = scalar_lea.sflag [#allocation13], %s417
        %s419 = sand.u32 %s159, 1
        %s420 = smul.addr %s419, 128
        %s421 = scalar_lea.vmem [#allocation12], %s420
        %p422 = pneg %p172
        %p423 = pneg %p169
        %s424 = sand.u32 %s29, 1
        %s425 = scalar_lea.sflag [#allocation13], %s424
        %s426 = sand.u32 %s185, 1
        %s427 = smul.addr %s426, 2
        %s428 = scalar_lea.vmem [#allocation14], %s427
        %p429 = pneg %p198
        %p430 = pneg %p195
        %p431 = pneg %p226
        %p432 = pneg %p223
        %s433 = sand.u32 %s213, 1
        %s434 = scalar_lea.sflag [#allocation5], %s433
        %s435 = sand.u32 %s213, 1
        %s436 = smul.addr %s435, 16
        %s437 = scalar_lea.vmem [#allocation15], %s436
        %s438 = smul.u32 2, %s33
        %s439 = smul.u32 2, %s34
        %s440 = smul.u32 2, %s34
        %s441 = smul.u32 2, %s33
        %s442 = smul.u32 2, %s34
        %p444 = scmp.eq.s32.totalorder %s34, 0
        // Predicated region
        $region77: #{tpu_custom_call.1} parent=47 // pred_check
          %p445 = pneg %p444
        $region78: #{tpu_custom_call.1} parent=47 // pred_check_branch
          %447 = sbr.rel (%p445) target = $region80
        $region79: #{tpu_custom_call.1} parent=47 // pred_region
          %v448 = vld [vmem:[%s363] sm:$0xf]
          %v449 = vld [vmem:[%s363 + $0x4] sm:$0xf]
          %v450 = vld [vmem:[#allocation6] sm:$0xf]
          %v451 = vld [vmem:[#allocation6 + $0x4] sm:$0xf]
          %v452 = vld [vmem:[#allocation6 + $0x8] sm:$0xf]
          %v453 = vld [vmem:[#allocation6 + $0xc] sm:$0xf]
          %v454 = vld [vmem:[#allocation6 + $0x10] sm:$0xf]
          %v455 = vld [vmem:[#allocation6 + $0x14] sm:$0xf]
          %v456 = vld [vmem:[#allocation6 + $0x18] sm:$0xf]
          %v457 = vld [vmem:[#allocation6 + $0x1c] sm:$0xf]
          %v458 = vld [vmem:[#allocation6 + $0x20] sm:$0xf]
          %v459 = vld [vmem:[#allocation6 + $0x24] sm:$0xf]
          %v460 = vld [vmem:[#allocation6 + $0x28] sm:$0xf]
          %v461 = vld [vmem:[#allocation6 + $0x2c] sm:$0xf]
          %v462 = vld [vmem:[#allocation6 + $0x30] sm:$0xf]
          %v463 = vld [vmem:[#allocation6 + $0x34] sm:$0xf]
          %v464 = vld [vmem:[#allocation6 + $0x38] sm:$0xf]
          %v465 = vld [vmem:[#allocation6 + $0x3c] sm:$0xf]
          %v466 = vld [vmem:[#allocation8] sm:$0x1]
          %v468 = vlaneseq
          %v469 = vshrl.u32 %v468, 7
          %v470 = vsub.s32 0, %v469
          %v471 = vrot.slane %v466, %v470
          %v475 = vunpack.c.l.b16 %v448
          %v476 = vunpack.c.l.b16 %v449
          %v477 = vpack.c.b16 %v476, %v475
          %v495 = vunpack.c.l.b16 %v450
          %v496 = vunpack.c.l.b16 %v451
          %v497 = vunpack.c.l.b16 %v452
          %v498 = vunpack.c.l.b16 %v453
          %v499 = vunpack.c.l.b16 %v454
          %v500 = vunpack.c.l.b16 %v455
          %v501 = vunpack.c.l.b16 %v456
          %v502 = vunpack.c.l.b16 %v457
          %v503 = vunpack.c.l.b16 %v458
          %v504 = vunpack.c.l.b16 %v459
          %v505 = vunpack.c.l.b16 %v460
          %v506 = vunpack.c.l.b16 %v461
          %v507 = vunpack.c.l.b16 %v462
          %v508 = vunpack.c.l.b16 %v463
          %v509 = vunpack.c.l.b16 %v464
          %v510 = vunpack.c.l.b16 %v465
          %v511 = vpack.c.b16 %v496, %v495
          %v512 = vpack.c.b16 %v498, %v497
          %v513 = vpack.c.b16 %v500, %v499
          %v514 = vpack.c.b16 %v502, %v501
          %v515 = vpack.c.b16 %v504, %v503
          %v516 = vpack.c.b16 %v506, %v505
          %v517 = vpack.c.b16 %v508, %v507
          %v518 = vpack.c.b16 %v510, %v509
          %527 = vmatprep.subr.bf16.mxu0 0
          %528 = vmatpush1.bf16.msra.mxu0 %v511
          %529 = vmatprep.subr.bf16.mxu0 0
          %530 = vmatpush1.bf16.msra.mxu0 %v512
          %531 = vmatprep.subr.bf16.mxu0 0
          %532 = vmatpush1.bf16.msra.mxu0 %v513
          %533 = vmatprep.subr.bf16.mxu0 0
          %534 = vmatpush1.bf16.msra.mxu0 %v514
          %535 = vmatprep.subr.bf16.mxu0 0
          %536 = vmatpush1.bf16.msra.mxu0 %v515
          %537 = vmatprep.subr.bf16.mxu0 0
          %538 = vmatpush1.bf16.msra.mxu0 %v516
          %539 = vmatprep.subr.bf16.mxu0 0
          %540 = vmatpush1.bf16.msra.mxu0 %v517
          %541 = vmatprep.subr.bf16.mxu0 0
          %542 = vmatpush1.bf16.msra.mxu0 %v518
          %543 = vmatprep.subr.bf16.mxu0 0
          %544 = vmatpush1.bf16.msra.mxu0 0
          %545 = vmatprep.subr.bf16.mxu0 0
          %546 = vmatpush1.bf16.msra.mxu0 0
          %547 = vmatprep.subr.bf16.mxu0 0
          %548 = vmatpush1.bf16.msra.mxu0 0
          %549 = vmatprep.subr.bf16.mxu0 0
          %550 = vmatpush1.bf16.msra.mxu0 0
          %551 = vmatprep.subr.bf16.mxu0 0
          %552 = vmatpush1.bf16.msra.mxu0 0
          %553 = vmatprep.subr.bf16.mxu0 0
          %554 = vmatpush1.bf16.msra.mxu0 0
          %555 = vmatprep.subr.bf16.mxu0 0
          %556 = vmatpush1.bf16.msra.mxu0 0
          %557 = vmatprep.subr.bf16.mxu0 0
          %558 = vmatpush1.bf16.msra.mxu0 0
          %559 = vmatprep.mubr.bf16.mxu0 0
          %560 = vmatmul.mubr.bf16.gmra.mrb[0].mxu0 %v477
          %v561 = vpop.f32.mrb[0].mxu0
          %v562 = vadd.f32 %v471, %v561
          %v563 = vpop.f32.mrb[0].mxu0
          %v564 = vpop.f32.mrb[0].mxu0
          %v565 = vadd.f32 %v471, %v564
          %v566 = vpop.f32.mrb[0].mxu0
          %567 = vdwg.mxu0
          %v568 = vmul.f32 %v562, 0.5
          %v569 = vmul.f32 %v565, 0.5
          %v570 = vmul.f32 %v562, 0.70710677
          %v571 = vmul.f32 %v565, 0.70710677
          %v572 = verf.f32.pop %v570
          %v573 = verf.f32.pop %v571
          %v574 = vadd.f32 %v572, 1.0
          %v575 = vadd.f32 %v573, 1.0
          %v576 = vmul.f32 %v568, %v574
          %v577 = vmul.f32 %v569, %v575
          %578 = vadd.xlane.f32.xlu0 %v576
          %v579 = vpop.xlane.xlu0 %578
          %580 = vadd.xlane.f32.xlu0 %v577
          %v581 = vpop.xlane.xlu0 %580
          %v582 = vrcp.pop 128.0
          %v583 = vmul.f32 %v579, %v582
          %v584 = vmul.f32 %v581, %v582
          %v585 = vsub.f32 %v576, %v583
          %v586 = vsub.f32 %v577, %v584
          %v587 = vmul.f32 %v585, %v585
          %v588 = vmul.f32 %v586, %v586
          %589 = vadd.xlane.f32.xlu0 %v587
          %v590 = vpop.xlane.xlu0 %589
          %591 = vadd.xlane.f32.xlu0 %v588
          %v592 = vpop.xlane.xlu0 %591
          %v593 = vmul.f32 %v590, %v582
          %v594 = vmul.f32 %v592, %v582
          %v595 = vadd.f32 %v593, 1e-12
          %v596 = vadd.f32 %v594, 1e-12
          %v597 = vrsqrt.pop %v595
          %v598 = vrsqrt.pop %v596
          %v599 = vmul.f32 %v585, %v597
          %v600 = vmul.f32 %v586, %v598
          %v601 = vld [vmem:[#allocation9] sm:$0x1]
          %v603 = vlaneseq
          %v604 = vshrl.u32 %v603, 7
          %v605 = vsub.s32 0, %v604
          %v606 = vrot.slane %v601, %v605
          %v608 = vmul.f32 %v599, %v606
          %v609 = vmul.f32 %v600, %v606
          %v610 = vld [vmem:[#allocation11] sm:$0x1]
          %v612 = vlaneseq
          %v613 = vshrl.u32 %v612, 7
          %v614 = vsub.s32 0, %v613
          %v615 = vrot.slane %v610, %v614
          %v617 = vadd.f32 %v608, %v615
          %v618 = vadd.f32 %v609, %v615
          %v619 = vpack.c.bf16 %v618, %v617
          %620 = vst [vmem:[#allocation2] sm:$0xff] %v619
        $region80: #{tpu_custom_call.1} parent=47 // pred_fallthru
          _
        %v621 = vld [vmem:[#allocation2] sm:$0xff]
        %v622 = vld [vmem:[%s388] sm:$0xff]
        %v623 = vld [vmem:[%s388 + $0x8] sm:$0xff]
        %v624 = vld [vmem:[%s388 + $0x10] sm:$0xff]
        %v625 = vld [vmem:[%s388 + $0x18] sm:$0xff]
        %v626 = vld [vmem:[%s388 + $0x20] sm:$0xff]
        %v627 = vld [vmem:[%s388 + $0x28] sm:$0xff]
        %v628 = vld [vmem:[%s388 + $0x30] sm:$0xff]
        %v629 = vld [vmem:[%s388 + $0x38] sm:$0xff]
        %v630 = vld [vmem:[%s388 + $0x40] sm:$0xff]
        %v631 = vld [vmem:[%s388 + $0x48] sm:$0xff]
        %v632 = vld [vmem:[%s388 + $0x50] sm:$0xff]
        %v633 = vld [vmem:[%s388 + $0x58] sm:$0xff]
        %v634 = vld [vmem:[%s388 + $0x60] sm:$0xff]
        %v635 = vld [vmem:[%s388 + $0x68] sm:$0xff]
        %v636 = vld [vmem:[%s388 + $0x70] sm:$0xff]
        %v637 = vld [vmem:[%s388 + $0x78] sm:$0xff]
        %v638 = vld [vmem:[%s397] sm:$0x3]
        %v640 = vlaneseq
        %v641 = vshrl.u32 %v640, 7
        %v642 = vsub.s32 0, %v641
        %v643 = vrot.slane %v638, %v642
        %v644 = vlaneseq
        %v645 = vshrl.u32 %v644, 7
        %v646 = vsub.s32 1, %v645
        %v647 = vrot.slane %v638, %v646
        %v666 = vunpack.c.l.b16 %v622
        %v667 = vunpack.c.h.b16 %v622
        %v668 = vunpack.c.l.b16 %v623
        %v669 = vunpack.c.h.b16 %v623
        %v670 = vunpack.c.l.b16 %v624
        %v671 = vunpack.c.h.b16 %v624
        %v672 = vunpack.c.l.b16 %v625
        %v673 = vunpack.c.h.b16 %v625
        %v674 = vunpack.c.l.b16 %v626
        %v675 = vunpack.c.h.b16 %v626
        %v676 = vunpack.c.l.b16 %v627
        %v677 = vunpack.c.h.b16 %v627
        %v678 = vunpack.c.l.b16 %v628
        %v679 = vunpack.c.h.b16 %v628
        %v680 = vunpack.c.l.b16 %v629
        %v681 = vunpack.c.h.b16 %v629
        %v682 = vunpack.c.l.b16 %v630
        %v683 = vunpack.c.h.b16 %v630
        %v684 = vunpack.c.l.b16 %v631
        %v685 = vunpack.c.h.b16 %v631
        %v686 = vunpack.c.l.b16 %v632
        %v687 = vunpack.c.h.b16 %v632
        %v688 = vunpack.c.l.b16 %v633
        %v689 = vunpack.c.h.b16 %v633
        %v690 = vunpack.c.l.b16 %v634
        %v691 = vunpack.c.h.b16 %v634
        %v692 = vunpack.c.l.b16 %v635
        %v693 = vunpack.c.h.b16 %v635
        %v694 = vunpack.c.l.b16 %v636
        %v695 = vunpack.c.h.b16 %v636
        %v696 = vunpack.c.l.b16 %v637
        %v697 = vunpack.c.h.b16 %v637
        %v698 = vpack.c.b16 %v668, %v666
        %v699 = vpack.c.b16 %v669, %v667
        %v700 = vpack.c.b16 %v672, %v670
        %v701 = vpack.c.b16 %v673, %v671
        %v702 = vpack.c.b16 %v676, %v674
        %v703 = vpack.c.b16 %v677, %v675
        %v704 = vpack.c.b16 %v680, %v678
        %v705 = vpack.c.b16 %v681, %v679
        %v706 = vpack.c.b16 %v684, %v682
        %v707 = vpack.c.b16 %v685, %v683
        %v708 = vpack.c.b16 %v688, %v686
        %v709 = vpack.c.b16 %v689, %v687
        %v710 = vpack.c.b16 %v692, %v690
        %v711 = vpack.c.b16 %v693, %v691
        %v712 = vpack.c.b16 %v696, %v694
        %v713 = vpack.c.b16 %v697, %v695
        %730 = vmatprep.subr.bf16.mxu0 %v699
        %731 = vmatpush1.bf16.msra.mxu0 %v698
        %732 = vmatprep.subr.bf16.mxu0 %v701
        %733 = vmatpush1.bf16.msra.mxu0 %v700
        %734 = vmatprep.subr.bf16.mxu0 %v703
        %735 = vmatpush1.bf16.msra.mxu0 %v702
        %736 = vmatprep.subr.bf16.mxu0 %v705
        %737 = vmatpush1.bf16.msra.mxu0 %v704
        %738 = vmatprep.subr.bf16.mxu0 %v707
        %739 = vmatpush1.bf16.msra.mxu0 %v706
        %740 = vmatprep.subr.bf16.mxu0 %v709
        %741 = vmatpush1.bf16.msra.mxu0 %v708
        %742 = vmatprep.subr.bf16.mxu0 %v711
        %743 = vmatpush1.bf16.msra.mxu0 %v710
        %744 = vmatprep.subr.bf16.mxu0 %v713
        %745 = vmatpush1.bf16.msra.mxu0 %v712
        %746 = vmatprep.subr.bf16.mxu0 0
        %747 = vmatpush1.bf16.msra.mxu0 0
        %748 = vmatprep.subr.bf16.mxu0 0
        %749 = vmatpush1.bf16.msra.mxu0 0
        %750 = vmatprep.subr.bf16.mxu0 0
        %751 = vmatpush1.bf16.msra.mxu0 0
        %752 = vmatprep.subr.bf16.mxu0 0
        %753 = vmatpush1.bf16.msra.mxu0 0
        %754 = vmatprep.subr.bf16.mxu0 0
        %755 = vmatpush1.bf16.msra.mxu0 0
        %756 = vmatprep.subr.bf16.mxu0 0
        %757 = vmatpush1.bf16.msra.mxu0 0
        %758 = vmatprep.subr.bf16.mxu0 0
        %759 = vmatpush1.bf16.msra.mxu0 0
        %760 = vmatprep.subr.bf16.mxu0 0
        %761 = vmatpush1.bf16.msra.mxu0 0
        %762 = vmatprep.mubr.bf16.mxu0 0
        %763 = vmatmul.mubr.bf16.gmra.mrb[0].mxu0 %v621
        %v764 = vpop.f32.mrb[0].mxu0
        %v765 = vadd.f32 %v643, %v764
        %v766 = vpop.f32.mrb[0].mxu0
        %v767 = vadd.f32 %v647, %v766
        %v768 = vpop.f32.mrb[0].mxu0
        %v769 = vadd.f32 %v643, %v768
        %v770 = vpop.f32.mrb[0].mxu0
        %v771 = vadd.f32 %v647, %v770
        %772 = vdwg.mxu0
        %v773 = vpack.c.bf16 %v769, %v765
        %v774 = vpack.c.bf16 %v771, %v767
        %v777 = vunpack.c.l.b16 %v773
        %v778 = vunpack.c.l.b16 %v774
        %v779 = vunpack.c.h.b16 %v773
        %v780 = vunpack.c.h.b16 %v774
        %v781 = vpack.c.b16 %v778, %v777
        %v782 = vpack.c.b16 %v780, %v779
        %785 = vst [vmem:[%s437] sm:$0xff] %v781
        %786 = vst [vmem:[%s437 + $0x8] sm:$0xff] %v782
        %s787 = sand.u32 %s213, 1
        %s788 = scalar_lea.sflag [#allocation5], %s787
        %s789 = sand.u32 %s213, 1
        %s790 = smul.addr %s789, 16
        %s791 = scalar_lea.vmem [#allocation15], %s790
        // Predicated region
        $region81: #{tpu_custom_call.1} parent=47 // pred_check
          %p792 = pneg %p223
        $region82: #{tpu_custom_call.1} parent=47 // pred_check_branch
          %794 = sbr.rel (%p792) target = $region84
        $region83: #{tpu_custom_call.1} parent=47 // pred_region
          %s795 = smul.u32 2, %s33
          %s796 = smul.u32 2, %s34
          %s798 = ssub.s32 256, 256
          %799 = vsyncadd %s788, %s798
          %s800 = smul.addr %s795, 8
          %s801 = sadd.s32 %s796, %s800
          %s802 = smul.addr %s801, 64
          %s803 = scalar_lea.hbm %s7, %s802
          %s804 = sshll.u32 %s791, 4
          %s805 = int_to_ptr.vmem [resolvable:$true] %s804
          %810 = dma.vmem_to_hbm [thread:$0]  %s805, 256, %s803, %s788, 128, 512, 8
        $region84: #{tpu_custom_call.1} parent=47 // pred_fallthru
          _
      $region48: #{tpu_custom_call.1} parent=5 // pred_fallthru
        _
      %p811 = scmp.le.s32.totalorder 2, %s24
      // Predicated region
      $region85: #{tpu_custom_call.1} parent=5 // pred_check
        %p812 = pneg %p811
      $region86: #{tpu_custom_call.1} parent=5 // pred_check_branch
        %814 = sbr.rel (%p812) target = $region88
      $region87: #{tpu_custom_call.1} parent=5 // pred_region
        %s815 = ssub.s32 %s24, 2
        // Predicated region
        $region89: #{tpu_custom_call.1} parent=87 // pred_check
          %p816 = pneg %p229
        $region90: #{tpu_custom_call.1} parent=87 // pred_check_branch
          %818 = sbr.rel (%p816) target = $region92
        $region91: #{tpu_custom_call.1} parent=87 // pred_region
          %s819 = sand.u32 %s214, 1
          %s820 = scalar_lea.sflag [#allocation5], %s819
          %s821 = sand.u32 %s214, 1
          %s822 = smul.addr %s821, 16
          %s823 = scalar_lea.vmem [#allocation15], %s822
          %824 = dma.done %s820, 256
        $region92: #{tpu_custom_call.1} parent=87 // pred_fallthru
          _
      $region88: #{tpu_custom_call.1} parent=5 // pred_fallthru
        _
    $region6: #{tpu_custom_call.1} parent=1 // loop_footer
      %s28 = sadd.s32 1, %s24
    $region7: #{tpu_custom_call.1} parent=1 // loop_footer_branch
      %23 = sbr.rel target = $region3
    $region8: #{tpu_custom_call.1} parent=1 // loop_exit
      _
    %825 = vsyncpa [#allocation4], 1
    %s826 = scalar_lea.sflag [#allocation4], 1
    %827 = vsyncpa %s826, 1
    %828 = vsyncpa [#allocation7], 1
    %829 = vsyncpa [#allocation10], 1
    %830 = vsyncpa [#allocation13], 1
    %s831 = scalar_lea.sflag [#allocation13], 1
    %832 = vsyncpa %s831, 1
    %833 = vsyncpa [#allocation5], 1
    %s834 = scalar_lea.sflag [#allocation5], 1
    %835 = vsyncpa %s834, 1

</llo_original>
